<compile_context>
chip_gen: v7x
topology: tpu7x:2x2x1
jax: 0.10.0
libtpu: 0.0.40
codegen_flags: <defaults>
</compile_context>

<pallas_src>
import functools

import jax
import jax.numpy as jnp
from jax.experimental import pallas as pl
from jax.experimental.pallas import tpu as pltpu


def _round_up(x, m):
    return ((x + m - 1) // m) * m


def _mlp_kernel(x_ref, w1_ref, b1_ref, w2_ref, b2_ref, o_ref, *, matmul_dtype):
    # Layer 1 on the MXU; x is cast to the MXU feed dtype in-kernel (VPU cast,
    # avoids a separate XLA pass over x in HBM).  f32 accumulation.
    x = x_ref[...].astype(matmul_dtype)
    h = jnp.dot(x, w1_ref[...], preferred_element_type=jnp.float32)      # (tb, H)
    # Bias + ReLU in f32 on the VPU.
    h = jnp.maximum(h + b1_ref[...], 0.0)
    # Layer 2 (H -> 1), produced directly as a lane-dense (1, tb) row:
    #   (1, H) . (tb, H)^T -> (1, tb)   (same NT dot pattern as q @ k^T)
    # so the store below is tb/128 unmasked vst's instead of tb/8 masked
    # single-lane stores.
    y = jax.lax.dot_general(w2_ref[...], h, (((1,), (1,)), ((), ())),
                            preferred_element_type=jnp.float32)          # (1, tb)
    y = y + b2_ref[0, 0]                                                  # SMEM scalar
    # Sigmoid on the EUP, store f32.
    o_ref[...] = jax.nn.sigmoid(y).astype(o_ref.dtype)


def _vmem_limit_bytes():
    # Budget VMEM from the actual chip (v7x: 64 MiB/TC, v5e/v6e: 128 MiB) with
    # ~30% headroom; conservative fallback if the query is unavailable.
    try:
        cap = pltpu.get_tpu_info().vmem_capacity_bytes
        return max(32 * 1024 * 1024, int(cap * 0.7))
    except Exception:
        return 48 * 1024 * 1024


def _choose_tb(B, D, block_b, vmem_limit):
    """Pick the batch tile size.

    * tiny batches: one exact-fit step (multiple of 8 sublanes).
    * otherwise: multiple of 128 (lane-dense output blocks), capped at
      ~B/2 (>=2 grid steps so v7x's two TensorCores both get work), at block_b,
      and so the two pipelined f32 x buffers stay within ~half the VMEM budget.
    """
    if B <= 128:
        return _round_up(B, 8)
    tb = min(block_b, _round_up(pl.cdiv(B, 2), 128))
    max_by_vmem = (vmem_limit // 2) // (2 * D * 4)
    max_by_vmem = max(128, (max_by_vmem // 128) * 128)
    return max(128, min(tb, max_by_vmem))


def nonlinear_classifier(x, w1, b1, w2, b2, *, block_b=4096,
                         matmul_dtype=jnp.bfloat16):
    """Fused forward pass of NonLinearClassifier.

    x:  (B, input_size)
    w1: (input_size, hidden_size)   b1: (hidden_size,)
    w2: (hidden_size, 1)            b2: (1,)
    returns: (B, 1) float32 probabilities
    """
    B, D = x.shape
    H = w1.shape[1]

    vmem_limit = _vmem_limit_bytes()
    tb = _choose_tb(B, D, block_b, vmem_limit)
    num_steps = pl.cdiv(B, tb)
    b_pad = num_steps * tb          # output is (1, b_pad); extra cols sliced off

    # Weights are loaded once and stay VMEM-resident, so wrapper-side casts on
    # them are essentially free (x is cast in-kernel instead).
    w1_mx = w1.astype(matmul_dtype)
    b1_row = b1.reshape(1, H).astype(jnp.float32)
    w2_row = w2.reshape(1, H).astype(jnp.float32)    # W2 as a lane-dense row
    b2_s = b2.reshape(1, 1).astype(jnp.float32)      # scalar -> SMEM

    kernel = functools.partial(_mlp_kernel, matmul_dtype=matmul_dtype)

    w_bytes = (D * H * jnp.dtype(matmul_dtype).itemsize) + 2 * H * 4 + 4
    cost = pl.CostEstimate(
        flops=2 * B * D * H + 2 * B * H,
        transcendentals=B,
        bytes_accessed=B * D * x.dtype.itemsize + w_bytes + b_pad * 4,
    )

    out = pl.pallas_call(
        kernel,
        out_shape=jax.ShapeDtypeStruct((1, b_pad), jnp.float32),
        grid_spec=pltpu.PrefetchScalarGridSpec(
            num_scalar_prefetch=0,
            grid=(num_steps,),
            in_specs=[
                pl.BlockSpec((tb, D), lambda i: (i, 0)),   # x tile (pipelined; last block clipped)
                pl.BlockSpec((D, H), lambda i: (0, 0)),    # W1 (VMEM-resident)
                pl.BlockSpec((1, H), lambda i: (0, 0)),    # b1 (resident)
                pl.BlockSpec((1, H), lambda i: (0, 0)),    # W2 row (resident)
                pl.BlockSpec(memory_space=pltpu.MemorySpace.SMEM),  # b2 scalar
            ],
            out_specs=pl.BlockSpec((1, tb), lambda i: (0, i)),      # lane-dense row
        ),
        compiler_params=pltpu.CompilerParams(
            dimension_semantics=("parallel",),
            vmem_limit_bytes=vmem_limit,
        ),
        cost_estimate=cost,
    )(x, w1_mx, b1_row, w2_row, b2_s)

    # (1, b_pad) lane-dense row -> (B, 1) like the PyTorch module.
    return out.reshape(-1)[:B].reshape(B, 1)


def reference_f32(x, w1, b1, w2, b2):
    h = jnp.maximum(x @ w1 + b1, 0.0)
    return jax.nn.sigmoid(h @ w2 + b2)


def reference_matched(x, w1, b1, w2, b2, matmul_dtype):
    # Mirrors the kernel's structure: MXU feed dtype + f32 accumulation for
    # layer 1, f32 elementwise, and the same NT dot_general for the H->1 head.
    h = jnp.dot(x.astype(matmul_dtype), w1.astype(matmul_dtype),
                preferred_element_type=jnp.float32)
    h = jnp.maximum(h + b1.reshape(1, -1), 0.0)
    y = jax.lax.dot_general(w2.reshape(1, -1), h, (((1,), (1,)), ((), ())),
                            preferred_element_type=jnp.float32)           # (1, B)
    y = y + b2.reshape(1, 1)
    return jax.nn.sigmoid(y).reshape(-1, 1)


if __name__ == "__main__":
    key = jax.random.PRNGKey(0)
    batch, input_size, hidden_size = 8, 32, 32

    k_x, k_w1, k_b1, k_w2, k_b2, k_x2 = jax.random.split(key, 6)
    x = jax.random.normal(k_x, (batch, input_size), dtype=jnp.float32)
    w1 = jax.random.normal(k_w1, (input_size, hidden_size), dtype=jnp.float32) * 0.1
    b1 = jax.random.normal(k_b1, (hidden_size,), dtype=jnp.float32) * 0.1
    w2 = jax.random.normal(k_w2, (hidden_size, 1), dtype=jnp.float32) * 0.1
    b2 = jax.random.normal(k_b2, (1,), dtype=jnp.float32) * 0.1

    # --- Small batch, default bf16 MXU feed ---------------------------------
    out = nonlinear_classifier(x, w1, b1, w2, b2)
    jax.block_until_ready(out)
    assert out.shape == (batch, 1)

    ref32 = reference_f32(x, w1, b1, w2, b2)
    refm = reference_matched(x, w1, b1, w2, b2, jnp.bfloat16)
    assert jnp.allclose(out, refm, atol=1e-4, rtol=1e-4), "mismatch vs bf16-matched reference"
    assert jnp.allclose(out, ref32, atol=5e-3, rtol=0.0), "mismatch vs f32 reference"

    # --- Full f32 path --------------------------------------------------------
    out_f32 = nonlinear_classifier(x, w1, b1, w2, b2, matmul_dtype=jnp.float32)
    jax.block_until_ready(out_f32)
    refm32 = reference_matched(x, w1, b1, w2, b2, jnp.float32)
    assert jnp.allclose(out_f32, refm32, atol=1e-4, rtol=1e-4), "mismatch vs f32-matched reference"
    assert jnp.allclose(out_f32, ref32, atol=1e-3, rtol=0.0), "mismatch vs f32 reference (f32 path)"

    # --- Larger, unaligned batch: multi-step grid + clipped final block ------
    big_batch = 1027
    x_big = jax.random.normal(k_x2, (big_batch, input_size), dtype=jnp.float32)
    out_big = nonlinear_classifier(x_big, w1, b1, w2, b2)
    jax.block_until_ready(out_big)
    assert out_big.shape == (big_batch, 1)
    ref_big = reference_f32(x_big, w1, b1, w2, b2)
    assert jnp.allclose(out_big, ref_big, atol=5e-3, rtol=0.0), "mismatch vs f32 reference (big batch)"

    print("KERNEL_OK")
</pallas_src>

<mosaic_0001>
module attributes {stable_mosaic.version = 11 : i64} {
  func.func @_mlp_kernel(%arg0: i32, %arg1: memref<8x32xf32, #tpu.memory_space<vmem>>, %arg2: memref<32x32xbf16, #tpu.memory_space<vmem>>, %arg3: memref<1x32xf32, #tpu.memory_space<vmem>>, %arg4: memref<1x32xf32, #tpu.memory_space<vmem>>, %arg5: memref<1x1xf32, #tpu.memory_space<smem>>, %arg6: memref<1x8xf32, #tpu.memory_space<vmem>>) attributes {dimension_semantics = [#tpu.dimension_semantics<parallel>], iteration_bounds = array<i64: 1>, scalar_prefetch = 0 : i64, scratch_operands = 0 : i64, tpu.core_type = #tpu.core_type<tc>, window_params = [{transform_indices = @transform_0, window_bounds = array<i64: 8, 32>}, {pipeline_mode = #tpu.pipeline_mode<synchronous>, transform_indices = @transform_1, window_bounds = array<i64: 32, 32>}, {pipeline_mode = #tpu.pipeline_mode<synchronous>, transform_indices = @transform_2, window_bounds = array<i64: 1, 32>}, {pipeline_mode = #tpu.pipeline_mode<synchronous>, transform_indices = @transform_3, window_bounds = array<i64: 1, 32>}, {transform_indices = @transform_4, window_bounds = array<i64: 1, 1>}, {transform_indices = @transform_5, window_bounds = array<i64: 1, 8>}]} {
    %c0 = arith.constant 0 : index
    %c0_0 = arith.constant 0 : index
    %0 = vector.load %arg1[%c0, %c0_0] : memref<8x32xf32, #tpu.memory_space<vmem>>, vector<8x32xf32>
    %1 = arith.truncf %0 : vector<8x32xf32> to vector<8x32xbf16>
    %c0_1 = arith.constant 0 : index
    %c0_2 = arith.constant 0 : index
    %2 = vector.load %arg2[%c0_1, %c0_2] : memref<32x32xbf16, #tpu.memory_space<vmem>>, vector<32x32xbf16>
    %cst = arith.constant dense<0.000000e+00> : vector<8x32xf32>
    %3 = tpu.matmul %1, %2, %cst {dimension_numbers = #tpu.dot_dimension_numbers<[1], [0], [0], [1], [0, 0, 1, 1], [], []>} : vector<8x32xbf16>, vector<32x32xbf16>, vector<8x32xf32> -> vector<8x32xf32>
    %c0_3 = arith.constant 0 : index
    %c0_4 = arith.constant 0 : index
    %4 = vector.load %arg3[%c0_3, %c0_4] : memref<1x32xf32, #tpu.memory_space<vmem>>, vector<1x32xf32>
    %5 = vector.broadcast %4 : vector<1x32xf32> to vector<8x32xf32>
    %6 = arith.addf %3, %5 : vector<8x32xf32>
    %cst_5 = arith.constant 0.000000e+00 : f32
    %7 = vector.broadcast %cst_5 : f32 to vector<8x32xf32>
    %8 = arith.maximumf %6, %7 : vector<8x32xf32>
    %c0_6 = arith.constant 0 : index
    %c0_7 = arith.constant 0 : index
    %9 = vector.load %arg4[%c0_6, %c0_7] : memref<1x32xf32, #tpu.memory_space<vmem>>, vector<1x32xf32>
    %cst_8 = arith.constant dense<0.000000e+00> : vector<1x8xf32>
    %10 = tpu.matmul %9, %8, %cst_8 {dimension_numbers = #tpu.dot_dimension_numbers<[1], [1], [0], [0], [0, 0, 1, 0], [], []>} : vector<1x32xf32>, vector<8x32xf32>, vector<1x8xf32> -> vector<1x8xf32>
    %c0_9 = arith.constant 0 : index
    %c0_10 = arith.constant 0 : index
    %11 = memref.load %arg5[%c0_9, %c0_10] : memref<1x1xf32, #tpu.memory_space<smem>>
    %12 = vector.broadcast %11 : f32 to vector<1x8xf32>
    %13 = arith.addf %10, %12 : vector<1x8xf32>
    %14 = arith.negf %13 : vector<1x8xf32>
    %15 = math.exp %14 : vector<1x8xf32>
    %cst_11 = arith.constant 1.000000e+00 : f32
    %16 = vector.broadcast %cst_11 : f32 to vector<1x8xf32>
    %17 = arith.addf %16, %15 : vector<1x8xf32>
    %18 = arith.divf %16, %17 : vector<1x8xf32>
    %c0_12 = arith.constant 0 : index
    %c0_13 = arith.constant 0 : index
    %19 = vector.load %arg6[%c0_12, %c0_13] : memref<1x8xf32, #tpu.memory_space<vmem>>, vector<1x8xf32>
    tpu.vector_store %arg6[%c0_12, %c0_13], %18 {strides = array<i32>} : memref<1x8xf32, #tpu.memory_space<vmem>>, vector<1x8xf32>,
    return
  }
  func.func @transform_0(%arg0: i32) -> (i32, i32) {
    %c0_i32 = arith.constant 0 : i32
    %c0_i32_0 = arith.constant 0 : i32
    return %arg0, %c0_i32 : i32, i32
  }
  func.func @transform_1(%arg0: i32) -> (i32, i32) {
    %c0_i32 = arith.constant 0 : i32
    %c0_i32_0 = arith.constant 0 : i32
    %c0_i32_1 = arith.constant 0 : i32
    return %c0_i32, %c0_i32_0 : i32, i32
  }
  func.func @transform_2(%arg0: i32) -> (i32, i32) {
    %c0_i32 = arith.constant 0 : i32
    %c0_i32_0 = arith.constant 0 : i32
    %c0_i32_1 = arith.constant 0 : i32
    return %c0_i32, %c0_i32_0 : i32, i32
  }
  func.func @transform_3(%arg0: i32) -> (i32, i32) {
    %c0_i32 = arith.constant 0 : i32
    %c0_i32_0 = arith.constant 0 : i32
    %c0_i32_1 = arith.constant 0 : i32
    return %c0_i32, %c0_i32_0 : i32, i32
  }
  func.func @transform_4(%arg0: i32) -> (i32, i32) {
    %c0_i32 = arith.constant 0 : i32
    %c0_i32_0 = arith.constant 0 : i32
    %c0_i32_1 = arith.constant 0 : i32
    return %c0_i32, %c0_i32_0 : i32, i32
  }
  func.func @transform_5(%arg0: i32) -> (i32, i32) {
    %c0_i32 = arith.constant 0 : i32
    %c0_i32_0 = arith.constant 0 : i32
    return %c0_i32, %arg0 : i32, i32
  }
}

</mosaic_0001>

<llo_original>
// kernel: tpu_custom_call.1
$region0: #{tpu_custom_call.1}
  #allocation0 [shape = 'u32[]', space=smem, size = 0x4, offset = 0x4, fixed_abs, tag = 'smem constant byte address 0x4 - core index']
  #allocation1 [shape = 'u32[144,128]{1,0:T(1,128)}', space=vmem, size = 0x12000, scoped, tag = 'internal scratch']
  #allocation2 [shape = 'f32[1,1]{1,0:T(1,128)S(6)}', space=smem, size = 0x200, scoped, tag = 'scoped memory for tpu_custom_call.1']
  %s0 = inlined_call_operand.hbm [shape: f32[8,32], index: 0, kind: input, shape index: {}]
  %s1 = inlined_call_operand.hbm [shape: bf16[32,32], index: 1, kind: input, shape index: {}]
  %s2 = inlined_call_operand.vmem [shape: f32[1,32], index: 2, kind: input, shape index: {}]
  %s3 = inlined_call_operand.vmem [shape: f32[1,32], index: 3, kind: input, shape index: {}]
  %s4 = inlined_call_operand.<no memory space> [shape: f32[1,1], index: 4, kind: input, shape index: {}]
  %s5 = inlined_call_operand.hbm [shape: f32[1,8], index: 5, kind: output, shape index: {}]
  %s6 = sld [smem:[#allocation0]]
  $region38: #{tpu_custom_call.1} parent=0
    _
  %s8 = ssub.s32 1, %s6
  %s9 = scalar_select 0, %s8, %s6
  %10 = sst [smem:[#allocation2]] %s4
  $region1: #{tpu_custom_call.1} parent=0
    #allocation3 [shape = 'u8[4096]{0}', space=vmem, size = 0x1000, scoped, tag = 'input window, operand 0, single buffered']
    #allocation4 [shape = 's32[1]{0}', space=sflag, size = 0x4, scoped, tag = 'scoped memory for tpu_custom_call.1']
    #allocation5 [shape = 's32[1]{0}', space=sflag, size = 0x4, scoped, tag = 'scoped memory for tpu_custom_call.1']
    #allocation6 [shape = 'u8[8192]{0}', space=vmem, size = 0x2000, scoped, tag = 'input window, operand 1, single buffered']
    #allocation7 [shape = 's32[1]{0}', space=sflag, size = 0x4, scoped, tag = 'scoped memory for tpu_custom_call.1']
    #allocation8 [shape = 'u8[512]{0}', space=vmem, size = 0x400, scoped, tag = 'output window, operand 0, single buffered']
    %11 = vsyncpa [#allocation4], 0
    %12 = vsyncpa [#allocation7], 0
    %13 = vsyncpa [#allocation5], 0
    // Predicated region
    $region2: #{tpu_custom_call.1} parent=1 // pred_check
      _
    $region3: #{tpu_custom_call.1} parent=1 // pred_check_branch
      %15 = sbr.rel (0) target = $region5
    $region4: #{tpu_custom_call.1} parent=1 // pred_region
      %s17 = ssub.s32 128, 128
      %18 = vsyncadd [#allocation4], %s17
      %s20 = sshll.u32 [#allocation3], 4
      %s21 = int_to_ptr.vmem [resolvable:$true] %s20
      %23 = dma.hbm_to_vmem [thread:$0]  %s0, 128, %s21, [#allocation4]
    $region5: #{tpu_custom_call.1} parent=1 // pred_fallthru
      _
    // Predicated region
    $region6: #{tpu_custom_call.1} parent=1 // pred_check
      _
    $region7: #{tpu_custom_call.1} parent=1 // pred_check_branch
      %25 = sbr.rel (0) target = $region9
    $region8: #{tpu_custom_call.1} parent=1 // pred_region
      %s27 = ssub.s32 256, 256
      %28 = vsyncadd [#allocation7], %s27
      %s29 = sshll.u32 [#allocation6], 4
      %s30 = int_to_ptr.vmem [resolvable:$true] %s29
      %35 = dma.hbm_to_vmem [thread:$0]  %s1, 256, %s30, [#allocation7], 64, 64, 4
    $region9: #{tpu_custom_call.1} parent=1 // pred_fallthru
      _
    // Predicated region
    $region10: #{tpu_custom_call.1} parent=1 // pred_check
      _
    $region11: #{tpu_custom_call.1} parent=1 // pred_check_branch
      %37 = sbr.rel (0) target = $region13
    $region12: #{tpu_custom_call.1} parent=1 // pred_region
      _
    $region13: #{tpu_custom_call.1} parent=1 // pred_fallthru
      _
    // Predicated region
    $region14: #{tpu_custom_call.1} parent=1 // pred_check
      _
    $region15: #{tpu_custom_call.1} parent=1 // pred_check_branch
      %39 = sbr.rel (0) target = $region17
    $region16: #{tpu_custom_call.1} parent=1 // pred_region
      _
    $region17: #{tpu_custom_call.1} parent=1 // pred_fallthru
      _
    // Predicated region
    $region18: #{tpu_custom_call.1} parent=1 // pred_check
      _
    $region19: #{tpu_custom_call.1} parent=1 // pred_check_branch
      %41 = sbr.rel (0) target = $region21
    $region20: #{tpu_custom_call.1} parent=1 // pred_region
      _
    $region21: #{tpu_custom_call.1} parent=1 // pred_fallthru
      _
    // Predicated region
    $region22: #{tpu_custom_call.1} parent=1 // pred_check
      _
    $region23: #{tpu_custom_call.1} parent=1 // pred_check_branch
      %43 = sbr.rel (0) target = $region25
    $region24: #{tpu_custom_call.1} parent=1 // pred_region
      %44 = dma.done [#allocation4], 128
    $region25: #{tpu_custom_call.1} parent=1 // pred_fallthru
      _
    // Predicated region
    $region26: #{tpu_custom_call.1} parent=1 // pred_check
      _
    $region27: #{tpu_custom_call.1} parent=1 // pred_check_branch
      %46 = sbr.rel (0) target = $region29
    $region28: #{tpu_custom_call.1} parent=1 // pred_region
      %47 = dma.done [#allocation7], 256
    $region29: #{tpu_custom_call.1} parent=1 // pred_fallthru
      _
    %v49 = vld [vmem:[#allocation3] sm:$0xff]
    %v50 = vpack.c.bf16 %v49, %v49
    %v51 = vld [vmem:[#allocation6] sm:$0xf]
    %v52 = vld [vmem:[#allocation6 + $0x4] sm:$0xf]
    %v53 = vld [vmem:[#allocation6 + $0x8] sm:$0xf]
    %v54 = vld [vmem:[#allocation6 + $0xc] sm:$0xf]
    %v55 = vld [vmem:[%s2] sm:$0x1]
    %v57 = vlaneseq
    %v58 = vshrl.u32 %v57, 7
    %v59 = vsub.s32 0, %v58
    %v60 = vrot.slane %v55, %v59
    %v66 = vunpack.c.l.b16 %v51
    %v67 = vunpack.c.l.b16 %v52
    %v68 = vunpack.c.l.b16 %v53
    %v69 = vunpack.c.l.b16 %v54
    %v70 = vpack.c.b16 %v67, %v66
    %v71 = vpack.c.b16 %v69, %v68
    %vm74 = vcmask 261120
    %v76 = vsel %vm74, %v50, 0
    %78 = vmatprep.subr.bf16.mxu0 0
    %79 = vmatpush1.bf16.msra.mxu0 %v70
    %80 = vmatprep.subr.bf16.mxu0 0
    %81 = vmatpush1.bf16.msra.mxu0 %v71
    %82 = vmatprep.subr.bf16.mxu0 0
    %83 = vmatpush1.bf16.msra.mxu0 0
    %84 = vmatprep.subr.bf16.mxu0 0
    %85 = vmatpush1.bf16.msra.mxu0 0
    %86 = vmatprep.subr.bf16.mxu0 0
    %87 = vmatpush1.bf16.msra.mxu0 0
    %88 = vmatprep.subr.bf16.mxu0 0
    %89 = vmatpush1.bf16.msra.mxu0 0
    %90 = vmatprep.subr.bf16.mxu0 0
    %91 = vmatpush1.bf16.msra.mxu0 0
    %92 = vmatprep.subr.bf16.mxu0 0
    %93 = vmatpush1.bf16.msra.mxu0 0
    %94 = vmatprep.subr.bf16.mxu0 0
    %95 = vmatpush1.bf16.msra.mxu0 0
    %96 = vmatprep.subr.bf16.mxu0 0
    %97 = vmatpush1.bf16.msra.mxu0 0
    %98 = vmatprep.subr.bf16.mxu0 0
    %99 = vmatpush1.bf16.msra.mxu0 0
    %100 = vmatprep.subr.bf16.mxu0 0
    %101 = vmatpush1.bf16.msra.mxu0 0
    %102 = vmatprep.subr.bf16.mxu0 0
    %103 = vmatpush1.bf16.msra.mxu0 0
    %104 = vmatprep.subr.bf16.mxu0 0
    %105 = vmatpush1.bf16.msra.mxu0 0
    %106 = vmatprep.subr.bf16.mxu0 0
    %107 = vmatpush1.bf16.msra.mxu0 0
    %108 = vmatprep.subr.bf16.mxu0 0
    %109 = vmatpush1.bf16.msra.mxu0 0
    %110 = vmatprep.mubr.bf16.mxu0 0
    %111 = vmatmul.mubr.bf16.gmra.mrb[0].mxu0 %v76
    %v112 = vpop.f32.mrb[0].mxu0
    %v113 = vadd.f32 %v60, %v112
    %v114 = vpop.f32.mrb[0].mxu0
    %v115 = vpop.f32.mrb[0].mxu0
    %v116 = vpop.f32.mrb[0].mxu0
    %117 = vdwg.mxu0
    %v118 = vmax.f32 %v113, 0.0
    %v119 = vld [vmem:[%s3] sm:$0x1]
    %s120 = sld [smem:[#allocation2]]
    %v121 = vstv %s120
    %v123 = vsel %vm74, %v119, 0
    %v126 = vsel %vm74, %v118, 0
    %128 = vmatprep.subr.mxu0 0.0
    %129 = vmatpush1.xpose.msra.mxu0 %v126
    %130 = vmatprep.subr.mxu0 0.0
    %131 = vmatpush1.xpose.msra.mxu0 0.0
    %132 = vmatprep.subr.mxu0 0.0
    %133 = vmatpush1.xpose.msra.mxu0 0.0
    %134 = vmatprep.subr.mxu0 0.0
    %135 = vmatpush1.xpose.msra.mxu0 0.0
    %136 = vmatprep.subr.mxu0 0.0
    %137 = vmatpush1.xpose.msra.mxu0 0.0
    %138 = vmatprep.subr.mxu0 0.0
    %139 = vmatpush1.xpose.msra.mxu0 0.0
    %140 = vmatprep.subr.mxu0 0.0
    %141 = vmatpush1.xpose.msra.mxu0 0.0
    %142 = vmatprep.subr.mxu0 0.0
    %143 = vmatpush1.xpose.msra.mxu0 0.0
    %144 = vmatprep.subr.mxu0 0.0
    %145 = vmatpush1.xpose.msra.mxu0 0.0
    %146 = vmatprep.subr.mxu0 0.0
    %147 = vmatpush1.xpose.msra.mxu0 0.0
    %148 = vmatprep.subr.mxu0 0.0
    %149 = vmatpush1.xpose.msra.mxu0 0.0
    %150 = vmatprep.subr.mxu0 0.0
    %151 = vmatpush1.xpose.msra.mxu0 0.0
    %152 = vmatprep.subr.mxu0 0.0
    %153 = vmatpush1.xpose.msra.mxu0 0.0
    %154 = vmatprep.subr.mxu0 0.0
    %155 = vmatpush1.xpose.msra.mxu0 0.0
    %156 = vmatprep.subr.mxu0 0.0
    %157 = vmatpush1.xpose.msra.mxu0 0.0
    %158 = vmatprep.subr.mxu0 0.0
    %159 = vmatpush1.xpose.msra.mxu0 0.0
    %160 = vmatprep.subr.mxu0 0.0
    %161 = vmatpush1.xpose.msra.mxu0 0.0
    %162 = vmatprep.subr.mxu0 0.0
    %163 = vmatpush1.xpose.msra.mxu0 0.0
    %164 = vmatprep.subr.mxu0 0.0
    %165 = vmatpush1.xpose.msra.mxu0 0.0
    %166 = vmatprep.subr.mxu0 0.0
    %167 = vmatpush1.xpose.msra.mxu0 0.0
    %168 = vmatprep.subr.mxu0 0.0
    %169 = vmatpush1.xpose.msra.mxu0 0.0
    %170 = vmatprep.subr.mxu0 0.0
    %171 = vmatpush1.xpose.msra.mxu0 0.0
    %172 = vmatprep.subr.mxu0 0.0
    %173 = vmatpush1.xpose.msra.mxu0 0.0
    %174 = vmatprep.subr.mxu0 0.0
    %175 = vmatpush1.xpose.msra.mxu0 0.0
    %176 = vmatprep.subr.mxu0 0.0
    %177 = vmatpush1.xpose.msra.mxu0 0.0
    %178 = vmatprep.subr.mxu0 0.0
    %179 = vmatpush1.xpose.msra.mxu0 0.0
    %180 = vmatprep.subr.mxu0 0.0
    %181 = vmatpush1.xpose.msra.mxu0 0.0
    %182 = vmatprep.subr.mxu0 0.0
    %183 = vmatpush1.xpose.msra.mxu0 0.0
    %184 = vmatprep.subr.mxu0 0.0
    %185 = vmatpush1.xpose.msra.mxu0 0.0
    %186 = vmatprep.subr.mxu0 0.0
    %187 = vmatpush1.xpose.msra.mxu0 0.0
    %188 = vmatprep.subr.mxu0 0.0
    %189 = vmatpush1.xpose.msra.mxu0 0.0
    %190 = vmatprep.subr.mxu0 0.0
    %191 = vmatpush1.xpose.msra.mxu0 0.0
    %192 = vmatprep.mubr.f32.mxu0 0.0
    %193 = vmatmul.mubr.f32.gmra.mrb[0].mxu0 %v123
    %v194 = vpop.f32.mrb[0].mxu0
    %v195 = vadd.f32 %v121, %v194
    %v196 = vpop.f32.mrb[0].mxu0
    %197 = vdwg.mxu0
    %v198 = vxor.u32 %v195, 2147483648
    %v199 = vmul.f32 %v198, 1.442695
    %v200 = vpow.pop %v199
    %v201 = vadd.f32 %v200, 1.0
    %v202 = vrcp.pop %v201
    %v203 = vmul.f32 1.0, %v202
    %vm204 = vcmask 57344
    %205 = vst.msk [vmem:[#allocation8] sm:$0x1] %vm204, %v203
    // Predicated region
    $region30: #{tpu_custom_call.1} parent=1 // pred_check
      _
    $region31: #{tpu_custom_call.1} parent=1 // pred_check_branch
      %207 = sbr.rel (0) target = $region33
    $region32: #{tpu_custom_call.1} parent=1 // pred_region
      %s209 = ssub.s32 16, 16
      %210 = vsyncadd [#allocation5], %s209
      %s212 = sshll.u32 [#allocation8], 4
      %s213 = int_to_ptr.vmem [resolvable:$true] %s212
      %215 = dma.vmem_to_hbm [thread:$0]  %s213, 16, %s5, [#allocation5]
    $region33: #{tpu_custom_call.1} parent=1 // pred_fallthru
      _
    // Predicated region
    $region34: #{tpu_custom_call.1} parent=1 // pred_check
      _
    $region35: #{tpu_custom_call.1} parent=1 // pred_check_branch
      %217 = sbr.rel (0) target = $region37
    $region36: #{tpu_custom_call.1} parent=1 // pred_region
      %218 = dma.done [#allocation5], 16
    $region37: #{tpu_custom_call.1} parent=1 // pred_fallthru
      _
    %219 = vsyncpa [#allocation4], 1
    %220 = vsyncpa [#allocation7], 1
    %221 = vsyncpa [#allocation5], 1

</llo_original>
